<compile_context>
chip_gen: v5e
topology: v5e:2x2
jax: 0.10.0
libtpu: 0.0.40
codegen_flags: <defaults>
</compile_context>

<pallas_src>
import functools

import jax
import jax.numpy as jnp
from jax.experimental import pallas as pl
from jax.experimental.pallas import tpu as pltpu

LAYER_NORM_EPS = 1e-12  # BERT default


# --------------------------------------------------------------------------- kernel

def _bert_self_output_kernel(x_ref, res_ref, w_ref, p_ref, o_ref, *, eps):
    # x_ref:   (tm, H) tile of hidden_states rows   (native dtype)
    # res_ref: (tm, H) matching tile of input_tensor (native dtype)
    # w_ref:   (H, H)  dense weight, (in, out) layout (compute dtype, resident)
    # p_ref:   (3, H)  f32 packed params: row 0 = dense bias, 1 = LN gamma, 2 = LN beta
    # o_ref:   (tm, H) output tile

    # Cast activations to the weight's compute dtype right before the MXU op
    # (avoids a separate wrapper-side HBM cast pass; hidden under the DMA).
    x = x_ref[...].astype(w_ref.dtype)
    h = jnp.dot(x, w_ref[...], preferred_element_type=jnp.float32)

    # Dropout: identity at inference.
    # TODO(synk): training-mode dropout would need pltpu.prng_* masking.

    p = p_ref[...]                                  # (3, H) f32
    bias, gamma, beta = p[0:1, :], p[1:2, :], p[2:3, :]

    # bias + residual add; residual consumed in its native dtype, accumulated in f32.
    h = h + res_ref[...].astype(jnp.float32) + bias

    # LayerNorm over the hidden (lane) axis, one-pass f32 statistics.
    mean = jnp.mean(h, axis=-1, keepdims=True)
    m2 = jnp.mean(h * h, axis=-1, keepdims=True)
    var = m2 - mean * mean
    inv = jax.lax.rsqrt(var + eps)

    # Fold gamma into the inv_std multiply (saves one full-tile VPU pass).
    o_ref[...] = ((h - mean) * (inv * gamma) + beta).astype(o_ref.dtype)


# --------------------------------------------------------------------------- helpers

def prepare_params(weight, bias, gamma, beta, *, compute_dtype=jnp.bfloat16):
    """Do the torch (out,in) -> (in,out) transpose, the low-precision weight
    cast and the bias/gamma/beta packing once, outside the per-call hot path."""
    H = weight.shape[0]
    w_t = jnp.asarray(weight).T.astype(compute_dtype)               # (in, out)
    params = jnp.stack([jnp.asarray(bias, dtype=jnp.float32).reshape(H),
                        jnp.asarray(gamma, dtype=jnp.float32).reshape(H),
                        jnp.asarray(beta, dtype=jnp.float32).reshape(H)],
                       axis=0)                                       # (3, H) f32
    return w_t, params


def _device_kind():
    try:
        return jax.devices()[0].device_kind.lower()
    except Exception:
        return ""


def _choose_tm(M, min_steps):
    # Big tiles for HBM bandwidth; `min_steps` keeps enough parallel grid steps
    # to feed both v7x TensorCores (>=8 there) without shrinking tiles on
    # single-TC v5e/v6e (>=4). Floor at 16 rows so bf16 blocks stay at or above
    # the native (16, 128) packed tile (no masked relayout for tiny M).
    for tm in (1024, 512, 256, 128, 64, 32, 16):
        if pl.cdiv(M, tm) >= min_steps:
            return tm
    return 16


def _vmem_limit_bytes(tm, H, w_dtype, x_dtype, r_dtype, out_dtype, is_v7x):
    xb = jnp.dtype(x_dtype).itemsize
    rb = jnp.dtype(r_dtype).itemsize
    ob = jnp.dtype(out_dtype).itemsize
    wb = jnp.dtype(w_dtype).itemsize
    est = (2 * tm * H * xb          # hidden tile, double-buffered
           + 2 * tm * H * rb        # residual tile, double-buffered
           + 2 * tm * H * ob        # output tile, double-buffered
           + 2 * H * H * wb         # dense weight (worst case two buffers)
           + 2 * 8 * H * 4)         # packed params (padded) + slack
    est = int(est * 1.3) + (2 << 20)   # ~1.3x margin + Mosaic internal scratch
    cap = (48 << 20) if is_v7x else (96 << 20)   # leave headroom on v7x's 64 MiB
    return int(max(16 << 20, min(est, cap)))


# --------------------------------------------------------------------------- wrapper

def bert_self_output_prepared(hidden_states, input_tensor, w_t, params,
                              *, tm=None, eps=LAYER_NORM_EPS, out_dtype=None):
    """hidden_states, input_tensor: (B, S, H); w_t: (H, H) in (in, out) layout;
    params: (3, H) f32 packed [bias; gamma; beta]."""
    B, S, H = hidden_states.shape
    assert w_t.shape == (H, H) and params.shape == (3, H)
    M = B * S
    if out_dtype is None:
        out_dtype = hidden_states.dtype    # mirror the reference semantics

    kind = _device_kind()
    is_v7x = "v7" in kind
    if tm is None:
        tm = _choose_tm(M, min_steps=8 if is_v7x else 4)

    # Free reshapes only; inputs are passed in their NATIVE dtype (no extra
    # HBM cast pass) and there is NO row padding: Pallas masks the ragged
    # boundary block's writes, and LayerNorm reduces only along H.
    x2 = hidden_states.reshape(M, H)
    r2 = input_tensor.reshape(M, H)

    kernel = functools.partial(_bert_self_output_kernel, eps=eps)
    cparams = pltpu.CompilerParams(
        dimension_semantics=("parallel",),
        vmem_limit_bytes=_vmem_limit_bytes(tm, H, w_t.dtype, x2.dtype,
                                           r2.dtype, out_dtype, is_v7x),
    )

    out = pl.pallas_call(
        kernel,
        out_shape=jax.ShapeDtypeStruct((M, H), out_dtype),
        grid_spec=pltpu.PrefetchScalarGridSpec(
            num_scalar_prefetch=0,
            grid=(pl.cdiv(M, tm),),
            in_specs=[
                pl.BlockSpec((tm, H), lambda i: (i, 0)),   # hidden rows
                pl.BlockSpec((tm, H), lambda i: (i, 0)),   # residual rows
                pl.BlockSpec((H, H), lambda i: (0, 0)),    # dense weight (DMA'd once)
                pl.BlockSpec((3, H), lambda i: (0, 0)),    # packed bias/gamma/beta
            ],
            out_specs=pl.BlockSpec((tm, H), lambda i: (i, 0)),
        ),
        compiler_params=cparams,
    )(x2, r2, w_t, params)

    return out.reshape(B, S, H)


def bert_self_output(hidden_states, input_tensor, weight, bias, gamma, beta,
                     *, tm=None, compute_dtype=jnp.bfloat16, eps=LAYER_NORM_EPS,
                     out_dtype=None):
    """Convenience entry: `weight` in torch nn.Linear layout (out, in).
    For repeated calls, run prepare_params() once and use the *_prepared path."""
    w_t, params = prepare_params(weight, bias, gamma, beta,
                                 compute_dtype=compute_dtype)
    return bert_self_output_prepared(hidden_states, input_tensor, w_t, params,
                                     tm=tm, eps=eps, out_dtype=out_dtype)


# --------------------------------------------------------------------------- reference

def reference(hidden_states, input_tensor, weight, bias, gamma, beta,
              eps=LAYER_NORM_EPS):
    y = hidden_states @ weight.T + bias
    h = y + input_tensor
    mean = jnp.mean(h, axis=-1, keepdims=True)
    var = jnp.mean((h - mean) ** 2, axis=-1, keepdims=True)
    return (h - mean) / jnp.sqrt(var + eps) * gamma + beta


if __name__ == "__main__":
    key = jax.random.PRNGKey(0)
    k1, k2, k3, k4, k5 = jax.random.split(key, 5)

    # Small but lane-dense (H multiple of 128); M=B*S deliberately NOT a
    # multiple of the tile so the ragged boundary-block path is exercised.
    B, S, H = 2, 61, 256

    hidden_states = jax.random.normal(k1, (B, S, H), dtype=jnp.float32)
    input_tensor = jax.random.normal(k2, (B, S, H), dtype=jnp.float32)
    weight = jax.random.normal(k3, (H, H), dtype=jnp.float32) * 0.02   # (out, in)
    bias = jax.random.normal(k4, (H,), dtype=jnp.float32) * 0.02
    gamma = 1.0 + 0.1 * jax.random.normal(k5, (H,), dtype=jnp.float32)
    beta = 0.1 * jnp.ones((H,), dtype=jnp.float32)

    ref = reference(hidden_states, input_tensor, weight, bias, gamma, beta)

    # f32 weight path: tight tolerance.
    out_f32 = jax.block_until_ready(
        bert_self_output(hidden_states, input_tensor, weight, bias, gamma, beta,
                         compute_dtype=jnp.float32))
    assert out_f32.shape == (B, S, H) and out_f32.dtype == hidden_states.dtype
    assert jnp.allclose(out_f32, ref, atol=1e-5, rtol=1e-5), "f32 mismatch vs reference"

    # Default bf16 streaming path (f32 MXU accumulation + f32 LayerNorm math).
    out_bf16 = jax.block_until_ready(
        bert_self_output(hidden_states, input_tensor, weight, bias, gamma, beta))
    assert jnp.allclose(out_bf16, ref, atol=5e-2, rtol=5e-2), "bf16 mismatch vs reference"

    print("KERNEL_OK")
</pallas_src>

<mosaic_0001>
module attributes {stable_mosaic.version = 11 : i64} {
  func.func @_bert_self_output_kernel(%arg0: i32, %arg1: memref<32x256xf32, #tpu.memory_space<vmem>>, %arg2: memref<32x256xf32, #tpu.memory_space<vmem>>, %arg3: memref<256x256xf32, #tpu.memory_space<vmem>>, %arg4: memref<3x256xf32, #tpu.memory_space<vmem>>, %arg5: memref<32x256xf32, #tpu.memory_space<vmem>>) attributes {dimension_semantics = [#tpu.dimension_semantics<parallel>], iteration_bounds = array<i64: 4>, scalar_prefetch = 0 : i64, scratch_operands = 0 : i64, tpu.core_type = #tpu.core_type<tc>, window_params = [{transform_indices = @transform_0, window_bounds = array<i64: 32, 256>}, {transform_indices = @transform_1, window_bounds = array<i64: 32, 256>}, {pipeline_mode = #tpu.pipeline_mode<synchronous>, transform_indices = @transform_2, window_bounds = array<i64: 256, 256>}, {pipeline_mode = #tpu.pipeline_mode<synchronous>, transform_indices = @transform_3, window_bounds = array<i64: 3, 256>}, {transform_indices = @transform_4, window_bounds = array<i64: 32, 256>}]} {
    %c0 = arith.constant 0 : index
    %c0_0 = arith.constant 0 : index
    %0 = vector.load %arg1[%c0, %c0_0] : memref<32x256xf32, #tpu.memory_space<vmem>>, vector<32x256xf32>
    %c0_1 = arith.constant 0 : index
    %c0_2 = arith.constant 0 : index
    %1 = vector.load %arg3[%c0_1, %c0_2] : memref<256x256xf32, #tpu.memory_space<vmem>>, vector<256x256xf32>
    %cst = arith.constant dense<0.000000e+00> : vector<32x256xf32>
    %2 = tpu.matmul %0, %1, %cst {dimension_numbers = #tpu.dot_dimension_numbers<[1], [0], [0], [1], [0, 0, 1, 1], [], []>} : vector<32x256xf32>, vector<256x256xf32>, vector<32x256xf32> -> vector<32x256xf32>
    %c0_3 = arith.constant 0 : index
    %c0_4 = arith.constant 0 : index
    %3 = vector.load %arg4[%c0_3, %c0_4] : memref<3x256xf32, #tpu.memory_space<vmem>>, vector<3x256xf32>
    %4 = vector.extract_strided_slice %3 {offsets = [0, 0], sizes = [1, 256], strides = [1, 1]} : vector<3x256xf32> to vector<1x256xf32>
    %5 = vector.extract_strided_slice %3 {offsets = [1, 0], sizes = [1, 256], strides = [1, 1]} : vector<3x256xf32> to vector<1x256xf32>
    %6 = vector.extract_strided_slice %3 {offsets = [2, 0], sizes = [1, 256], strides = [1, 1]} : vector<3x256xf32> to vector<1x256xf32>
    %c0_5 = arith.constant 0 : index
    %c0_6 = arith.constant 0 : index
    %7 = vector.load %arg2[%c0_5, %c0_6] : memref<32x256xf32, #tpu.memory_space<vmem>>, vector<32x256xf32>
    %8 = arith.addf %2, %7 : vector<32x256xf32>
    %9 = vector.broadcast %4 : vector<1x256xf32> to vector<32x256xf32>
    %10 = arith.addf %8, %9 : vector<32x256xf32>
    %cst_7 = arith.constant dense<0.000000e+00> : vector<32xf32>
    %11 = vector.multi_reduction <add>, %10, %cst_7 [1] : vector<32x256xf32> to vector<32xf32>
    %12 = vector.shape_cast %11 : vector<32xf32> to vector<32x1xf32>
    %cst_8 = arith.constant 2.560000e+02 : f32
    %13 = vector.broadcast %cst_8 : f32 to vector<32x1xf32>
    %14 = arith.divf %12, %13 : vector<32x1xf32>
    %15 = arith.mulf %10, %10 : vector<32x256xf32>
    %cst_9 = arith.constant dense<0.000000e+00> : vector<32xf32>
    %16 = vector.multi_reduction <add>, %15, %cst_9 [1] : vector<32x256xf32> to vector<32xf32>
    %17 = vector.shape_cast %16 : vector<32xf32> to vector<32x1xf32>
    %cst_10 = arith.constant 2.560000e+02 : f32
    %18 = vector.broadcast %cst_10 : f32 to vector<32x1xf32>
    %19 = arith.divf %17, %18 : vector<32x1xf32>
    %20 = arith.mulf %14, %14 : vector<32x1xf32>
    %21 = arith.subf %19, %20 : vector<32x1xf32>
    %cst_11 = arith.constant 9.99999996E-13 : f32
    %22 = vector.broadcast %cst_11 : f32 to vector<32x1xf32>
    %23 = arith.addf %21, %22 : vector<32x1xf32>
    %24 = math.rsqrt %23 : vector<32x1xf32>
    %25 = vector.broadcast %14 : vector<32x1xf32> to vector<32x256xf32>
    %26 = arith.subf %10, %25 : vector<32x256xf32>
    %27 = vector.broadcast %24 : vector<32x1xf32> to vector<32x256xf32>
    %28 = vector.broadcast %5 : vector<1x256xf32> to vector<32x256xf32>
    %29 = arith.mulf %27, %28 : vector<32x256xf32>
    %30 = arith.mulf %26, %29 : vector<32x256xf32>
    %31 = vector.broadcast %6 : vector<1x256xf32> to vector<32x256xf32>
    %32 = arith.addf %30, %31 : vector<32x256xf32>
    %c0_12 = arith.constant 0 : index
    %c0_13 = arith.constant 0 : index
    %33 = vector.load %arg5[%c0_12, %c0_13] : memref<32x256xf32, #tpu.memory_space<vmem>>, vector<32x256xf32>
    tpu.vector_store %arg5[%c0_12, %c0_13], %32 {strides = array<i32>} : memref<32x256xf32, #tpu.memory_space<vmem>>, vector<32x256xf32>,
    return
  }
  func.func @transform_0(%arg0: i32) -> (i32, i32) {
    %c0_i32 = arith.constant 0 : i32
    %c0_i32_0 = arith.constant 0 : i32
    return %arg0, %c0_i32 : i32, i32
  }
  func.func @transform_1(%arg0: i32) -> (i32, i32) {
    %c0_i32 = arith.constant 0 : i32
    %c0_i32_0 = arith.constant 0 : i32
    return %arg0, %c0_i32 : i32, i32
  }
  func.func @transform_2(%arg0: i32) -> (i32, i32) {
    %c0_i32 = arith.constant 0 : i32
    %c0_i32_0 = arith.constant 0 : i32
    %c0_i32_1 = arith.constant 0 : i32
    return %c0_i32, %c0_i32_0 : i32, i32
  }
  func.func @transform_3(%arg0: i32) -> (i32, i32) {
    %c0_i32 = arith.constant 0 : i32
    %c0_i32_0 = arith.constant 0 : i32
    %c0_i32_1 = arith.constant 0 : i32
    return %c0_i32, %c0_i32_0 : i32, i32
  }
  func.func @transform_4(%arg0: i32) -> (i32, i32) {
    %c0_i32 = arith.constant 0 : i32
    %c0_i32_0 = arith.constant 0 : i32
    return %arg0, %c0_i32 : i32, i32
  }
}

</mosaic_0001>

<llo_original>
// kernel: tpu_custom_call.1
$region0: #{tpu_custom_call.1}
  #allocation0 [shape = 'u32[]', space=smem, size = 0x4, offset = 0x4, fixed_abs, tag = 'smem constant byte address 0x4 - core index']
  #allocation1 [shape = 'u32[72,128]{1,0:T(1,128)}', space=vmem, size = 0x9000, scoped, tag = 'internal scratch']
  %s0 = inlined_call_operand.hbm [shape: f32[122,256], index: 0, kind: input, shape index: {}]
  %s1 = inlined_call_operand.hbm [shape: f32[122,256], index: 1, kind: input, shape index: {}]
  %s2 = inlined_call_operand.hbm [shape: f32[256,256], index: 2, kind: input, shape index: {}]
  %s3 = inlined_call_operand.hbm [shape: f32[3,256], index: 3, kind: input, shape index: {}]
  %s4 = inlined_call_operand.hbm [shape: f32[122,256], index: 4, kind: output, shape index: {}]
  %s5 = sld [smem:[#allocation0]]
  $region65: #{tpu_custom_call.1} parent=0
    _
  %s7 = ssub.s32 1, %s5
  %s8 = scalar_select 0, %s7, %s5
  $region1: #{tpu_custom_call.1} parent=0
    #allocation2 [shape = 'u8[65536]{0}', space=vmem, size = 0x10000, scoped, tag = 'input window, operand 0']
    #allocation3 [shape = 's32[2]{0}', space=sflag, size = 0x8, scoped, tag = 'scoped memory for tpu_custom_call.1']
    #allocation4 [shape = 's32[2]{0}', space=sflag, size = 0x8, scoped, tag = 'scoped memory for tpu_custom_call.1']
    #allocation5 [shape = 'u8[65536]{0}', space=vmem, size = 0x10000, scoped, tag = 'input window, operand 1']
    #allocation6 [shape = 's32[2]{0}', space=sflag, size = 0x8, scoped, tag = 'scoped memory for tpu_custom_call.1']
    #allocation7 [shape = 'u8[262144]{0}', space=vmem, size = 0x40000, scoped, tag = 'input window, operand 2, single buffered']
    #allocation8 [shape = 'u8[4096]{0}', space=vmem, size = 0x1000, scoped, tag = 'input window, operand 3, single buffered']
    #allocation9 [shape = 's32[1]{0}', space=sflag, size = 0x4, scoped, tag = 'scoped memory for tpu_custom_call.1']
    #allocation10 [shape = 'u8[65536]{0}', space=vmem, size = 0x10000, scoped, tag = 'output window, operand 0']
    %9 = vsyncpa [#allocation3], 0
    %s10 = scalar_lea.sflag [#allocation3], 1
    %11 = vsyncpa %s10, 0
    %12 = vsyncpa [#allocation6], 0
    %s13 = scalar_lea.sflag [#allocation6], 1
    %14 = vsyncpa %s13, 0
    %15 = vsyncpa [#allocation9], 0
    %16 = vsyncpa [#allocation4], 0
    %s17 = scalar_lea.sflag [#allocation4], 1
    %18 = vsyncpa %s17, 0
    loop: start=0, step=1, limit=6
    $region2: #{tpu_custom_call.1} parent=1 // loop_pre_header
      _
    $region3: #{tpu_custom_call.1} parent=1 // loop_header
      %s20 = sphi 0, %s24
      %p21 = scmp.ge.s32.totalorder %s20, 6
      %s30 = sphi 0, %s32
      %s33 = sphi 0, %s30
      %s34 = sphi 0, %s33
      %s50 = sphi 0, %s34
      %s56 = sphi 0, %s58
      %s59 = sphi 0, %s56
      %s60 = sphi 0, %s59
      %s76 = sphi 0, %s60
      %s80 = sphi 0, %s80
      %s82 = sphi 0, %s80
      %s83 = sphi 0, %s82
      %s97 = sphi 0, %s83
      %s101 = sphi 0, %s101
      %s103 = sphi 0, %s101
      %s104 = sphi 0, %s103
      %s118 = sphi 0, %s104
      %s124 = sphi 0, %s126
      %s127 = sphi 0, %s124
      %s128 = sphi 0, %s127
      %s144 = sphi 0, %s128
    $region4: #{tpu_custom_call.1} parent=1 // loop_header_branch
      %23 = sbr.rel (%p21) target = $region8
    $region5: #{tpu_custom_call.1} parent=1 // loop_body
      %s25 = ssub.s32 %s20, 1
      %s26 = ssub.s32 %s20, 2
      %s27 = sadd.s32 %s20, 1
      %s28 = ssub.s32 %s20, %s27
      %p29 = scmp.eq.s32.totalorder %s28, 0
      %s31 = sadd.s32 %s30, 1
      %s32 = scalar_select %p29, %s30, %s31
      %p35 = pneg %p29
      %p36 = scmp.eq.s32.totalorder %s20, 3
      %p37 = por %p35, %p36
      %p38 = scmp.ne.s32.totalorder %s30, %s33
      %p39 = scmp.eq.s32.totalorder %s20, 0
      %p40 = por %p38, %p39
      %p41 = scmp.ne.s32.totalorder %s30, %s33
      %p42 = scmp.eq.s32.totalorder %s25, 3
      %p43 = por %p41, %p42
      %p44 = scmp.ne.s32.totalorder %s33, %s34
      %p45 = scmp.eq.s32.totalorder %s25, 0
      %p46 = por %p44, %p45
      %p47 = scmp.ne.s32.totalorder %s33, %s34
      %p48 = scmp.eq.s32.totalorder %s26, 3
      %p49 = por %p47, %p48
      %p51 = scmp.ne.s32.totalorder %s34, %s50
      %p52 = scmp.eq.s32.totalorder %s26, 0
      %p53 = por %p51, %p52
      %s54 = ssub.s32 %s20, %s27
      %p55 = scmp.eq.s32.totalorder %s54, 0
      %s57 = sadd.s32 %s56, 1
      %s58 = scalar_select %p55, %s56, %s57
      %p61 = pneg %p55
      %p62 = scmp.eq.s32.totalorder %s20, 3
      %p63 = por %p61, %p62
      %p64 = scmp.ne.s32.totalorder %s56, %s59
      %p65 = scmp.eq.s32.totalorder %s20, 0
      %p66 = por %p64, %p65
      %p67 = scmp.ne.s32.totalorder %s56, %s59
      %p68 = scmp.eq.s32.totalorder %s25, 3
      %p69 = por %p67, %p68
      %p70 = scmp.ne.s32.totalorder %s59, %s60
      %p71 = scmp.eq.s32.totalorder %s25, 0
      %p72 = por %p70, %p71
      %p73 = scmp.ne.s32.totalorder %s59, %s60
      %p74 = scmp.eq.s32.totalorder %s26, 3
      %p75 = por %p73, %p74
      %p77 = scmp.ne.s32.totalorder %s60, %s76
      %p78 = scmp.eq.s32.totalorder %s26, 0
      %p79 = por %p77, %p78
      %s81 = sadd.s32 %s80, 1
      %p84 = scmp.eq.s32.totalorder %s20, 3
      %p85 = scmp.ne.s32.totalorder %s80, %s82
      %p86 = scmp.eq.s32.totalorder %s20, 0
      %p87 = por %p85, %p86
      %p88 = scmp.ne.s32.totalorder %s80, %s82
      %p89 = scmp.eq.s32.totalorder %s25, 3
      %p90 = por %p88, %p89
      %p91 = scmp.ne.s32.totalorder %s82, %s83
      %p92 = scmp.eq.s32.totalorder %s25, 0
      %p93 = por %p91, %p92
      %p94 = scmp.ne.s32.totalorder %s82, %s83
      %p95 = scmp.eq.s32.totalorder %s26, 3
      %p96 = por %p94, %p95
      %p98 = scmp.ne.s32.totalorder %s83, %s97
      %p99 = scmp.eq.s32.totalorder %s26, 0
      %p100 = por %p98, %p99
      %s102 = sadd.s32 %s101, 1
      %p105 = scmp.eq.s32.totalorder %s20, 3
      %p106 = scmp.ne.s32.totalorder %s101, %s103
      %p107 = scmp.eq.s32.totalorder %s20, 0
      %p108 = por %p106, %p107
      %p109 = scmp.ne.s32.totalorder %s101, %s103
      %p110 = scmp.eq.s32.totalorder %s25, 3
      %p111 = por %p109, %p110
      %p112 = scmp.ne.s32.totalorder %s103, %s104
      %p113 = scmp.eq.s32.totalorder %s25, 0
      %p114 = por %p112, %p113
      %p115 = scmp.ne.s32.totalorder %s103, %s104
      %p116 = scmp.eq.s32.totalorder %s26, 3
      %p117 = por %p115, %p116
      %p119 = scmp.ne.s32.totalorder %s104, %s118
      %p120 = scmp.eq.s32.totalorder %s26, 0
      %p121 = por %p119, %p120
      %s122 = ssub.s32 %s20, %s27
      %p123 = scmp.eq.s32.totalorder %s122, 0
      %s125 = sadd.s32 %s124, 1
      %s126 = scalar_select %p123, %s124, %s125
      %p129 = pneg %p123
      %p130 = scmp.eq.s32.totalorder %s20, 3
      %p131 = por %p129, %p130
      %p132 = scmp.ne.s32.totalorder %s124, %s127
      %p133 = scmp.eq.s32.totalorder %s20, 0
      %p134 = por %p132, %p133
      %p135 = scmp.ne.s32.totalorder %s124, %s127
      %p136 = scmp.eq.s32.totalorder %s25, 3
      %p137 = por %p135, %p136
      %p138 = scmp.ne.s32.totalorder %s127, %s128
      %p139 = scmp.eq.s32.totalorder %s25, 0
      %p140 = por %p138, %p139
      %p141 = scmp.ne.s32.totalorder %s127, %s128
      %p142 = scmp.eq.s32.totalorder %s26, 3
      %p143 = por %p141, %p142
      %p145 = scmp.ne.s32.totalorder %s128, %s144
      %p146 = scmp.eq.s32.totalorder %s26, 0
      %p147 = por %p145, %p146
      %p148 = scmp.le.s32.totalorder 1, %s20
      %p149 = scmp.lt.s32.totalorder %s20, 5
      %p150 = pnand %p148, %p149
      %p151 = pneg %p150
      // Predicated region
      $region9: #{tpu_custom_call.1} parent=5 // pred_check
        _
      $region10: #{tpu_custom_call.1} parent=5 // pred_check_branch
        %153 = sbr.rel (%p150) target = $region12
      $region11: #{tpu_custom_call.1} parent=5 // pred_region
        %s154 = ssub.s32 %s20, 1
        // Predicated region
        $region13: #{tpu_custom_call.1} parent=11 // pred_check
          %p155 = pneg %p93
        $region14: #{tpu_custom_call.1} parent=11 // pred_check_branch
          %157 = sbr.rel (%p155) target = $region16
        $region15: #{tpu_custom_call.1} parent=11 // pred_region
          %159 = vsyncadd [#allocation6], 0
          %s160 = sshll.u32 %s2, 4
          %s161 = int_to_ptr.hbm [resolvable:$true] %s160
          %s162 = sshll.u32 [#allocation7], 4
          %s163 = int_to_ptr.vmem [resolvable:$true] %s162
          %168 = dma.hbm_to_vmem [thread:$0]  %s161, 8192, %s163, [#allocation6], 256, 256, 16
        $region16: #{tpu_custom_call.1} parent=11 // pred_fallthru
          _
        // Predicated region
        $region17: #{tpu_custom_call.1} parent=11 // pred_check
          %p169 = pneg %p114
        $region18: #{tpu_custom_call.1} parent=11 // pred_check_branch
          %171 = sbr.rel (%p169) target = $region20
        $region19: #{tpu_custom_call.1} parent=11 // pred_region
          %173 = vsyncadd [#allocation9], 0
          %s175 = sshll.u32 %s3, 4
          %s176 = int_to_ptr.hbm [resolvable:$true] %s175
          %s177 = sshll.u32 [#allocation8], 4
          %s178 = int_to_ptr.vmem [resolvable:$true] %s177
          %180 = dma.hbm_to_vmem [thread:$0]  %s176, 128, %s178, [#allocation9]
        $region20: #{tpu_custom_call.1} parent=11 // pred_fallthru
          _
      $region12: #{tpu_custom_call.1} parent=5 // pred_fallthru
        _
      %p181 = scmp.lt.s32.totalorder %s20, 4
      // Predicated region
      $region21: #{tpu_custom_call.1} parent=5 // pred_check
        %p182 = pneg %p181
      $region22: #{tpu_custom_call.1} parent=5 // pred_check_branch
        %184 = sbr.rel (%p182) target = $region24
      $region23: #{tpu_custom_call.1} parent=5 // pred_region
        // Predicated region
        $region25: #{tpu_custom_call.1} parent=23 // pred_check
          %p185 = pneg %p40
        $region26: #{tpu_custom_call.1} parent=23 // pred_check_branch
          %187 = sbr.rel (%p185) target = $region28
        $region27: #{tpu_custom_call.1} parent=23 // pred_region
          %s188 = sand.u32 %s30, 1
          %s189 = scalar_lea.sflag [#allocation3], %s188
          %s190 = sand.u32 %s30, 1
          %s191 = smul.addr %s190, 64
          %s192 = scalar_lea.vmem [#allocation2], %s191
          %s193 = smul.u32 4, %s20
          %195 = vsyncadd %s189, 0
          %s196 = smul.addr %s193, 2
          %s197 = smul.addr %s196, 8
          %s198 = scalar_lea.hbm %s0, %s197
          %s199 = sshll.u32 %s198, 4
          %s200 = int_to_ptr.hbm [resolvable:$true] %s199
          %s201 = sshll.u32 %s192, 4
          %s202 = int_to_ptr.vmem [resolvable:$true] %s201
          %207 = dma.hbm_to_vmem [thread:$0]  %s200, 1024, %s202, %s189, 256, 256, 16
        $region28: #{tpu_custom_call.1} parent=23 // pred_fallthru
          _
        // Predicated region
        $region29: #{tpu_custom_call.1} parent=23 // pred_check
          %p208 = pneg %p66
        $region30: #{tpu_custom_call.1} parent=23 // pred_check_branch
          %210 = sbr.rel (%p208) target = $region32
        $region31: #{tpu_custom_call.1} parent=23 // pred_region
          %s211 = sand.u32 %s20, 1
          %s212 = scalar_lea.sflag [#allocation6], %s211
          %s213 = sand.u32 %s56, 1
          %s214 = smul.addr %s213, 64
          %s215 = scalar_lea.vmem [#allocation5], %s214
          %s216 = smul.u32 4, %s20
          %218 = vsyncadd %s212, 0
          %s219 = smul.addr %s216, 2
          %s220 = smul.addr %s219, 8
          %s221 = scalar_lea.hbm %s1, %s220
          %s222 = sshll.u32 %s221, 4
          %s223 = int_to_ptr.hbm [resolvable:$true] %s222
          %s224 = sshll.u32 %s215, 4
          %s225 = int_to_ptr.vmem [resolvable:$true] %s224
          %230 = dma.hbm_to_vmem [thread:$0]  %s223, 1024, %s225, %s212, 256, 256, 16
        $region32: #{tpu_custom_call.1} parent=23 // pred_fallthru
          _
      $region24: #{tpu_custom_call.1} parent=5 // pred_fallthru
        _
      %p231 = scmp.le.s32.totalorder 1, %s20
      %p232 = scmp.lt.s32.totalorder %s20, 5
      %p233 = pnand %p231, %p232
      %p234 = pneg %p233
      // Predicated region
      $region33: #{tpu_custom_call.1} parent=5 // pred_check
        _
      $region34: #{tpu_custom_call.1} parent=5 // pred_check_branch
        %236 = sbr.rel (%p233) target = $region36
      $region35: #{tpu_custom_call.1} parent=5 // pred_region
        %s237 = ssub.s32 %s20, 1
        %s238 = sand.u32 %s33, 1
        %s239 = scalar_lea.sflag [#allocation3], %s238
        %s240 = sand.u32 %s33, 1
        %s241 = smul.addr %s240, 64
        %s242 = scalar_lea.vmem [#allocation2], %s241
        // Predicated region
        $region37: #{tpu_custom_call.1} parent=35 // pred_check
          %p243 = pneg %p46
        $region38: #{tpu_custom_call.1} parent=35 // pred_check_branch
          %245 = sbr.rel (%p243) target = $region40
        $region39: #{tpu_custom_call.1} parent=35 // pred_region
          %247 = dma.done %s239, 1024
        $region40: #{tpu_custom_call.1} parent=35 // pred_fallthru
          _
        %s248 = sand.u32 %s25, 1
        %s249 = scalar_lea.sflag [#allocation6], %s248
        %s250 = sand.u32 %s59, 1
        %s251 = smul.addr %s250, 64
        %s252 = scalar_lea.vmem [#allocation5], %s251
        // Predicated region
        $region41: #{tpu_custom_call.1} parent=35 // pred_check
          %p253 = pneg %p72
        $region42: #{tpu_custom_call.1} parent=35 // pred_check_branch
          %255 = sbr.rel (%p253) target = $region44
        $region43: #{tpu_custom_call.1} parent=35 // pred_region
          %257 = dma.done %s249, 1024
        $region44: #{tpu_custom_call.1} parent=35 // pred_fallthru
          _
        // Predicated region
        $region45: #{tpu_custom_call.1} parent=35 // pred_check
          %p258 = pneg %p93
        $region46: #{tpu_custom_call.1} parent=35 // pred_check_branch
          %260 = sbr.rel (%p258) target = $region48
        $region47: #{tpu_custom_call.1} parent=35 // pred_region
          %262 = dma.done [#allocation6], 8192
        $region48: #{tpu_custom_call.1} parent=35 // pred_fallthru
          _
        // Predicated region
        $region49: #{tpu_custom_call.1} parent=35 // pred_check
          %p263 = pneg %p114
        $region50: #{tpu_custom_call.1} parent=35 // pred_check_branch
          %265 = sbr.rel (%p263) target = $region52
        $region51: #{tpu_custom_call.1} parent=35 // pred_region
          %267 = dma.done [#allocation9], 128
        $region52: #{tpu_custom_call.1} parent=35 // pred_fallthru
          _
        %s268 = sand.u32 %s33, 1
        %s269 = scalar_lea.sflag [#allocation3], %s268
        %s270 = sand.u32 %s33, 1
        %s271 = smul.addr %s270, 64
        %s272 = scalar_lea.vmem [#allocation2], %s271
        %p273 = pneg %p46
        %p274 = pneg %p43
        %s275 = sand.u32 %s25, 1
        %s276 = scalar_lea.sflag [#allocation6], %s275
        %s277 = sand.u32 %s59, 1
        %s278 = smul.addr %s277, 64
        %s279 = scalar_lea.vmem [#allocation5], %s278
        %p280 = pneg %p72
        %p281 = pneg %p69
        %p282 = pneg %p93
        %p283 = pneg %p90
        %p284 = pneg %p114
        %p285 = pneg %p111
        %p286 = pneg %p140
        %p287 = pneg %p137
        %s288 = sand.u32 %s127, 1
        %s289 = scalar_lea.sflag [#allocation4], %s288
        %s290 = sand.u32 %s127, 1
        %s291 = smul.addr %s290, 64
        %s292 = scalar_lea.vmem [#allocation10], %s291
        %s293 = smul.u32 4, %s25
        %s294 = smul.u32 4, %s25
        %s295 = smul.u32 4, %s25
        %v296 = vld [vmem:[%s242] sm:$0xff]
        %v297 = vld [vmem:[%s242 + $0x8] sm:$0xff]
        %v298 = vld [vmem:[%s242 + $0x10] sm:$0xff]
        %v299 = vld [vmem:[%s242 + $0x18] sm:$0xff]
        %v300 = vld [vmem:[%s242 + $0x20] sm:$0xff]
        %v301 = vld [vmem:[%s242 + $0x28] sm:$0xff]
        %v302 = vld [vmem:[%s242 + $0x30] sm:$0xff]
        %v303 = vld [vmem:[%s242 + $0x38] sm:$0xff]
        %v304 = vld [vmem:[#allocation7] sm:$0xff]
        %v305 = vld [vmem:[#allocation7 + $0x8] sm:$0xff]
        %v306 = vld [vmem:[#allocation7 + $0x10] sm:$0xff]
        %v307 = vld [vmem:[#allocation7 + $0x18] sm:$0xff]
        %v308 = vld [vmem:[#allocation7 + $0x20] sm:$0xff]
        %v309 = vld [vmem:[#allocation7 + $0x28] sm:$0xff]
        %v310 = vld [vmem:[#allocation7 + $0x30] sm:$0xff]
        %v311 = vld [vmem:[#allocation7 + $0x38] sm:$0xff]
        %v312 = vld [vmem:[#allocation7 + $0x40] sm:$0xff]
        %v313 = vld [vmem:[#allocation7 + $0x48] sm:$0xff]
        %v314 = vld [vmem:[#allocation7 + $0x50] sm:$0xff]
        %v315 = vld [vmem:[#allocation7 + $0x58] sm:$0xff]
        %v316 = vld [vmem:[#allocation7 + $0x60] sm:$0xff]
        %v317 = vld [vmem:[#allocation7 + $0x68] sm:$0xff]
        %v318 = vld [vmem:[#allocation7 + $0x70] sm:$0xff]
        %v319 = vld [vmem:[#allocation7 + $0x78] sm:$0xff]
        %v320 = vld [vmem:[#allocation7 + $0x80] sm:$0xff]
        %v321 = vld [vmem:[#allocation7 + $0x88] sm:$0xff]
        %v322 = vld [vmem:[#allocation7 + $0x90] sm:$0xff]
        %v323 = vld [vmem:[#allocation7 + $0x98] sm:$0xff]
        %v324 = vld [vmem:[#allocation7 + $0xa0] sm:$0xff]
        %v325 = vld [vmem:[#allocation7 + $0xa8] sm:$0xff]
        %v326 = vld [vmem:[#allocation7 + $0xb0] sm:$0xff]
        %v327 = vld [vmem:[#allocation7 + $0xb8] sm:$0xff]
        %v328 = vld [vmem:[#allocation7 + $0xc0] sm:$0xff]
        %v329 = vld [vmem:[#allocation7 + $0xc8] sm:$0xff]
        %v330 = vld [vmem:[#allocation7 + $0xd0] sm:$0xff]
        %v331 = vld [vmem:[#allocation7 + $0xd8] sm:$0xff]
        %v332 = vld [vmem:[#allocation7 + $0xe0] sm:$0xff]
        %v333 = vld [vmem:[#allocation7 + $0xe8] sm:$0xff]
        %v334 = vld [vmem:[#allocation7 + $0xf0] sm:$0xff]
        %v335 = vld [vmem:[#allocation7 + $0xf8] sm:$0xff]
        %v336 = vld [vmem:[#allocation7 + $0x100] sm:$0xff]
        %v337 = vld [vmem:[#allocation7 + $0x108] sm:$0xff]
        %v338 = vld [vmem:[#allocation7 + $0x110] sm:$0xff]
        %v339 = vld [vmem:[#allocation7 + $0x118] sm:$0xff]
        %v340 = vld [vmem:[#allocation7 + $0x120] sm:$0xff]
        %v341 = vld [vmem:[#allocation7 + $0x128] sm:$0xff]
        %v342 = vld [vmem:[#allocation7 + $0x130] sm:$0xff]
        %v343 = vld [vmem:[#allocation7 + $0x138] sm:$0xff]
        %v344 = vld [vmem:[#allocation7 + $0x140] sm:$0xff]
        %v345 = vld [vmem:[#allocation7 + $0x148] sm:$0xff]
        %v346 = vld [vmem:[#allocation7 + $0x150] sm:$0xff]
        %v347 = vld [vmem:[#allocation7 + $0x158] sm:$0xff]
        %v348 = vld [vmem:[#allocation7 + $0x160] sm:$0xff]
        %v349 = vld [vmem:[#allocation7 + $0x168] sm:$0xff]
        %v350 = vld [vmem:[#allocation7 + $0x170] sm:$0xff]
        %v351 = vld [vmem:[#allocation7 + $0x178] sm:$0xff]
        %v352 = vld [vmem:[#allocation7 + $0x180] sm:$0xff]
        %v353 = vld [vmem:[#allocation7 + $0x188] sm:$0xff]
        %v354 = vld [vmem:[#allocation7 + $0x190] sm:$0xff]
        %v355 = vld [vmem:[#allocation7 + $0x198] sm:$0xff]
        %v356 = vld [vmem:[#allocation7 + $0x1a0] sm:$0xff]
        %v357 = vld [vmem:[#allocation7 + $0x1a8] sm:$0xff]
        %v358 = vld [vmem:[#allocation7 + $0x1b0] sm:$0xff]
        %v359 = vld [vmem:[#allocation7 + $0x1b8] sm:$0xff]
        %v360 = vld [vmem:[#allocation7 + $0x1c0] sm:$0xff]
        %v361 = vld [vmem:[#allocation7 + $0x1c8] sm:$0xff]
        %v362 = vld [vmem:[#allocation7 + $0x1d0] sm:$0xff]
        %v363 = vld [vmem:[#allocation7 + $0x1d8] sm:$0xff]
        %v364 = vld [vmem:[#allocation7 + $0x1e0] sm:$0xff]
        %v365 = vld [vmem:[#allocation7 + $0x1e8] sm:$0xff]
        %v366 = vld [vmem:[#allocation7 + $0x1f0] sm:$0xff]
        %v367 = vld [vmem:[#allocation7 + $0x1f8] sm:$0xff]
        %v368 = vld [vmem:[#allocation8] sm:$0x77]
        %v369 = vld [vmem:[%s252] sm:$0xff]
        %v370 = vld [vmem:[%s252 + $0x8] sm:$0xff]
        %v371 = vld [vmem:[%s252 + $0x10] sm:$0xff]
        %v372 = vld [vmem:[%s252 + $0x18] sm:$0xff]
        %v373 = vld [vmem:[%s252 + $0x20] sm:$0xff]
        %v374 = vld [vmem:[%s252 + $0x28] sm:$0xff]
        %v375 = vld [vmem:[%s252 + $0x30] sm:$0xff]
        %v376 = vld [vmem:[%s252 + $0x38] sm:$0xff]
        %377 = vmatpush.msra.mxu0 %v334
        %378 = vmatpush.msra.mxu0 %v332
        %379 = vmatpush.msra.mxu0 %v330
        %380 = vmatpush.msra.mxu0 %v328
        %381 = vmatpush.msra.mxu0 %v326
        %382 = vmatpush.msra.mxu0 %v324
        %383 = vmatpush.msra.mxu0 %v322
        %384 = vmatpush.msra.mxu0 %v320
        %385 = vmatpush.msra.mxu0 %v318
        %386 = vmatpush.msra.mxu0 %v316
        %387 = vmatpush.msra.mxu0 %v314
        %388 = vmatpush.msra.mxu0 %v312
        %389 = vmatpush.msra.mxu0 %v310
        %390 = vmatpush.msra.mxu0 %v308
        %391 = vmatpush.msra.mxu0 %v306
        %392 = vmatpush.msra.mxu0 %v304
        %393 = vmatmul.f32.gmra.mxu0 %v296
        %v394 = vpop.f32.mrf.mxu0
        %v395 = vadd.f32 %v369, %v394
        %396 = vmatmul.f32.gmra.mxu0 %v298
        %v397 = vpop.f32.mrf.mxu0
        %v398 = vadd.f32 %v371, %v397
        %399 = vmatmul.f32.gmra.mxu0 %v300
        %v400 = vpop.f32.mrf.mxu0
        %v401 = vadd.f32 %v373, %v400
        %402 = vmatmul.f32.gmra.mxu0 %v302
        %v403 = vpop.f32.mrf.mxu0
        %v404 = vadd.f32 %v375, %v403
        %405 = vdwg.mxu0
        %406 = vmatpush.msra.mxu0 %v366
        %407 = vmatpush.msra.mxu0 %v364
        %408 = vmatpush.msra.mxu0 %v362
        %409 = vmatpush.msra.mxu0 %v360
        %410 = vmatpush.msra.mxu0 %v358
        %411 = vmatpush.msra.mxu0 %v356
        %412 = vmatpush.msra.mxu0 %v354
        %413 = vmatpush.msra.mxu0 %v352
        %414 = vmatpush.msra.mxu0 %v350
        %415 = vmatpush.msra.mxu0 %v348
        %416 = vmatpush.msra.mxu0 %v346
        %417 = vmatpush.msra.mxu0 %v344
        %418 = vmatpush.msra.mxu0 %v342
        %419 = vmatpush.msra.mxu0 %v340
        %420 = vmatpush.msra.mxu0 %v338
        %421 = vmatpush.msra.mxu0 %v336
        %422 = vmatmul.f32.gmra.mxu0 %v297
        %v423 = vpop.f32.mrf.mxu0
        %v424 = vadd.f32 %v395, %v423
        %425 = vmatmul.f32.gmra.mxu0 %v299
        %v426 = vpop.f32.mrf.mxu0
        %v427 = vadd.f32 %v398, %v426
        %428 = vmatmul.f32.gmra.mxu0 %v301
        %v429 = vpop.f32.mrf.mxu0
        %v430 = vadd.f32 %v401, %v429
        %431 = vmatmul.f32.gmra.mxu0 %v303
        %v432 = vpop.f32.mrf.mxu0
        %v433 = vadd.f32 %v404, %v432
        %434 = vdwg.mxu0
        %435 = vmatpush.msra.mxu0 %v335
        %436 = vmatpush.msra.mxu0 %v333
        %437 = vmatpush.msra.mxu0 %v331
        %438 = vmatpush.msra.mxu0 %v329
        %439 = vmatpush.msra.mxu0 %v327
        %440 = vmatpush.msra.mxu0 %v325
        %441 = vmatpush.msra.mxu0 %v323
        %442 = vmatpush.msra.mxu0 %v321
        %443 = vmatpush.msra.mxu0 %v319
        %444 = vmatpush.msra.mxu0 %v317
        %445 = vmatpush.msra.mxu0 %v315
        %446 = vmatpush.msra.mxu0 %v313
        %447 = vmatpush.msra.mxu0 %v311
        %448 = vmatpush.msra.mxu0 %v309
        %449 = vmatpush.msra.mxu0 %v307
        %450 = vmatpush.msra.mxu0 %v305
        %451 = vmatmul.f32.gmra.mxu0 %v296
        %v452 = vpop.f32.mrf.mxu0
        %v453 = vadd.f32 %v370, %v452
        %454 = vmatmul.f32.gmra.mxu0 %v298
        %v455 = vpop.f32.mrf.mxu0
        %v456 = vadd.f32 %v372, %v455
        %457 = vmatmul.f32.gmra.mxu0 %v300
        %v458 = vpop.f32.mrf.mxu0
        %v459 = vadd.f32 %v374, %v458
        %460 = vmatmul.f32.gmra.mxu0 %v302
        %v461 = vpop.f32.mrf.mxu0
        %v462 = vadd.f32 %v376, %v461
        %463 = vdwg.mxu0
        %464 = vmatpush.msra.mxu0 %v367
        %465 = vmatpush.msra.mxu0 %v365
        %466 = vmatpush.msra.mxu0 %v363
        %467 = vmatpush.msra.mxu0 %v361
        %468 = vmatpush.msra.mxu0 %v359
        %469 = vmatpush.msra.mxu0 %v357
        %470 = vmatpush.msra.mxu0 %v355
        %471 = vmatpush.msra.mxu0 %v353
        %472 = vmatpush.msra.mxu0 %v351
        %473 = vmatpush.msra.mxu0 %v349
        %474 = vmatpush.msra.mxu0 %v347
        %475 = vmatpush.msra.mxu0 %v345
        %476 = vmatpush.msra.mxu0 %v343
        %477 = vmatpush.msra.mxu0 %v341
        %478 = vmatpush.msra.mxu0 %v339
        %479 = vmatpush.msra.mxu0 %v337
        %480 = vmatmul.f32.gmra.mxu0 %v297
        %v481 = vpop.f32.mrf.mxu0
        %v482 = vadd.f32 %v453, %v481
        %483 = vmatmul.f32.gmra.mxu0 %v299
        %v484 = vpop.f32.mrf.mxu0
        %v485 = vadd.f32 %v456, %v484
        %486 = vmatmul.f32.gmra.mxu0 %v301
        %v487 = vpop.f32.mrf.mxu0
        %v488 = vadd.f32 %v459, %v487
        %489 = vmatmul.f32.gmra.mxu0 %v303
        %v490 = vpop.f32.mrf.mxu0
        %v491 = vadd.f32 %v462, %v490
        %492 = vdwg.mxu0
        %v494 = vperm.slane %v368, 0
        %v495 = vperm.slane %v368, 4
        %v498 = vperm.slane %v494, 0
        %v499 = vperm.slane %v495, 0
        %v500 = vadd.f32 %v424, %v498
        %v501 = vadd.f32 %v482, %v499
        %v502 = vadd.f32 %v427, %v498
        %v503 = vadd.f32 %v485, %v499
        %v504 = vadd.f32 %v430, %v498
        %v505 = vadd.f32 %v488, %v499
        %v506 = vadd.f32 %v433, %v498
        %v507 = vadd.f32 %v491, %v499
        %v508 = vadd.f32 %v500, %v501
        %509 = vadd.xlane.f32.xlu0 %v508
        %v510 = vpop.xlane.xlu0 %509
        %v511 = vadd.f32 %v502, %v503
        %512 = vadd.xlane.f32.xlu0 %v511
        %v513 = vpop.xlane.xlu0 %512
        %v514 = vadd.f32 %v504, %v505
        %515 = vadd.xlane.f32.xlu0 %v514
        %v516 = vpop.xlane.xlu0 %515
        %v517 = vadd.f32 %v506, %v507
        %518 = vadd.xlane.f32.xlu0 %v517
        %v519 = vpop.xlane.xlu0 %518
        %v520 = vrcp.pop 256.0
        %v521 = vmul.f32 256.0, %v520
        %v522 = vsub.f32 1.0, %v521
        %v523 = vmul.f32 %v520, %v522
        %v524 = vadd.f32 %v520, %v523
        %vm525 = vweird.f32 %v520
        %v526 = vsel %vm525, %v520, %v524
        %v527 = vmul.f32 %v510, %v526
        %v528 = vmul.f32 %v513, %v526
        %v529 = vmul.f32 %v516, %v526
        %v530 = vmul.f32 %v519, %v526
        %v531 = vmul.f32 %v500, %v500
        %v532 = vmul.f32 %v501, %v501
        %v533 = vmul.f32 %v502, %v502
        %v534 = vmul.f32 %v503, %v503
        %v535 = vmul.f32 %v504, %v504
        %v536 = vmul.f32 %v505, %v505
        %v537 = vmul.f32 %v506, %v506
        %v538 = vmul.f32 %v507, %v507
        %v539 = vadd.f32 %v531, %v532
        %540 = vadd.xlane.f32.xlu0 %v539
        %v541 = vpop.xlane.xlu0 %540
        %v542 = vadd.f32 %v533, %v534
        %543 = vadd.xlane.f32.xlu0 %v542
        %v544 = vpop.xlane.xlu0 %543
        %v545 = vadd.f32 %v535, %v536
        %546 = vadd.xlane.f32.xlu0 %v545
        %v547 = vpop.xlane.xlu0 %546
        %v548 = vadd.f32 %v537, %v538
        %549 = vadd.xlane.f32.xlu0 %v548
        %v550 = vpop.xlane.xlu0 %549
        %v551 = vmul.f32 %v541, %v526
        %v552 = vmul.f32 %v544, %v526
        %v553 = vmul.f32 %v547, %v526
        %v554 = vmul.f32 %v550, %v526
        %v555 = vmul.f32 %v527, %v527
        %v556 = vmul.f32 %v528, %v528
        %v557 = vmul.f32 %v529, %v529
        %v558 = vmul.f32 %v530, %v530
        %v559 = vsub.f32 %v551, %v555
        %v560 = vsub.f32 %v552, %v556
        %v561 = vsub.f32 %v553, %v557
        %v562 = vsub.f32 %v554, %v558
        %v563 = vadd.f32 %v559, 1e-12
        %v564 = vadd.f32 %v560, 1e-12
        %v565 = vadd.f32 %v561, 1e-12
        %v566 = vadd.f32 %v562, 1e-12
        %v567 = vrsqrt.pop %v563
        %v568 = vmul.f32 %v567, %v563
        %v569 = vmul.f32 %v568, %v567
        %v570 = vmul.f32 0.5, %v569
        %v571 = vsub.f32 1.5, %v570
        %v572 = vmul.f32 %v567, %v571
        %vm573 = vweird.f32 %v563
        %vm574 = vweird.f32 %v567
        %vm575 = vmor %vm573, %vm574
        %v576 = vsel %vm575, %v567, %v572
        %v577 = vrsqrt.pop %v564
        %v578 = vmul.f32 %v577, %v564
        %v579 = vmul.f32 %v578, %v577
        %v580 = vmul.f32 0.5, %v579
        %v581 = vsub.f32 1.5, %v580
        %v582 = vmul.f32 %v577, %v581
        %vm583 = vweird.f32 %v564
        %vm584 = vweird.f32 %v577
        %vm585 = vmor %vm583, %vm584
        %v586 = vsel %vm585, %v577, %v582
        %v587 = vrsqrt.pop %v565
        %v588 = vmul.f32 %v587, %v565
        %v589 = vmul.f32 %v588, %v587
        %v590 = vmul.f32 0.5, %v589
        %v591 = vsub.f32 1.5, %v590
        %v592 = vmul.f32 %v587, %v591
        %vm593 = vweird.f32 %v565
        %vm594 = vweird.f32 %v587
        %vm595 = vmor %vm593, %vm594
        %v596 = vsel %vm595, %v587, %v592
        %v597 = vrsqrt.pop %v566
        %v598 = vmul.f32 %v597, %v566
        %v599 = vmul.f32 %v598, %v597
        %v600 = vmul.f32 0.5, %v599
        %v601 = vsub.f32 1.5, %v600
        %v602 = vmul.f32 %v597, %v601
        %vm603 = vweird.f32 %v566
        %vm604 = vweird.f32 %v597
        %vm605 = vmor %vm603, %vm604
        %v606 = vsel %vm605, %v597, %v602
        %v607 = vsub.f32 %v500, %v527
        %v608 = vsub.f32 %v501, %v527
        %v609 = vsub.f32 %v502, %v528
        %v610 = vsub.f32 %v503, %v528
        %v611 = vsub.f32 %v504, %v529
        %v612 = vsub.f32 %v505, %v529
        %v613 = vsub.f32 %v506, %v530
        %v614 = vsub.f32 %v507, %v530
        %v615 = vperm.slane %v368, 1
        %v616 = vperm.slane %v368, 5
        %v619 = vperm.slane %v615, 1
        %v620 = vperm.slane %v616, 1
        %v621 = vmul.f32 %v576, %v619
        %v622 = vmul.f32 %v576, %v620
        %v623 = vmul.f32 %v586, %v619
        %v624 = vmul.f32 %v586, %v620
        %v625 = vmul.f32 %v596, %v619
        %v626 = vmul.f32 %v596, %v620
        %v627 = vmul.f32 %v606, %v619
        %v628 = vmul.f32 %v606, %v620
        %v629 = vmul.f32 %v607, %v621
        %v630 = vmul.f32 %v608, %v622
        %v631 = vmul.f32 %v609, %v623
        %v632 = vmul.f32 %v610, %v624
        %v633 = vmul.f32 %v611, %v625
        %v634 = vmul.f32 %v612, %v626
        %v635 = vmul.f32 %v613, %v627
        %v636 = vmul.f32 %v614, %v628
        %v637 = vperm.slane %v368, 2
        %v638 = vperm.slane %v368, 6
        %v641 = vperm.slane %v637, 2
        %v642 = vperm.slane %v638, 2
        %v643 = vadd.f32 %v629, %v641
        %v644 = vadd.f32 %v630, %v642
        %v645 = vadd.f32 %v631, %v641
        %v646 = vadd.f32 %v632, %v642
        %v647 = vadd.f32 %v633, %v641
        %v648 = vadd.f32 %v634, %v642
        %v649 = vadd.f32 %v635, %v641
        %v650 = vadd.f32 %v636, %v642
        %651 = vst [vmem:[%s292] sm:$0xff] %v643
        %652 = vst [vmem:[%s292 + $0x8] sm:$0xff] %v644
        %653 = vst [vmem:[%s292 + $0x10] sm:$0xff] %v645
        %654 = vst [vmem:[%s292 + $0x18] sm:$0xff] %v646
        %655 = vst [vmem:[%s292 + $0x20] sm:$0xff] %v647
        %656 = vst [vmem:[%s292 + $0x28] sm:$0xff] %v648
        %657 = vst [vmem:[%s292 + $0x30] sm:$0xff] %v649
        %658 = vst [vmem:[%s292 + $0x38] sm:$0xff] %v650
        %s659 = sand.u32 %s127, 1
        %s660 = scalar_lea.sflag [#allocation4], %s659
        %s661 = sand.u32 %s127, 1
        %s662 = smul.addr %s661, 64
        %s663 = scalar_lea.vmem [#allocation10], %s662
        // Predicated region
        $region53: #{tpu_custom_call.1} parent=35 // pred_check
          %p664 = pneg %p137
        $region54: #{tpu_custom_call.1} parent=35 // pred_check_branch
          %666 = sbr.rel (%p664) target = $region56
        $region55: #{tpu_custom_call.1} parent=35 // pred_region
          %s667 = smul.u32 4, %s25
          %669 = vsyncadd %s660, 0
          %s670 = smul.addr %s667, 2
          %s671 = smul.addr %s670, 8
          %s672 = scalar_lea.hbm %s4, %s671
          %s673 = sshll.u32 %s663, 4
          %s674 = int_to_ptr.vmem [resolvable:$true] %s673
          %s675 = sshll.u32 %s672, 4
          %s676 = int_to_ptr.hbm [resolvable:$true] %s675
          %681 = dma.vmem_to_hbm [thread:$0]  %s674, 1024, %s676, %s660, 256, 256, 16
        $region56: #{tpu_custom_call.1} parent=35 // pred_fallthru
          _
      $region36: #{tpu_custom_call.1} parent=5 // pred_fallthru
        _
      %p682 = scmp.le.s32.totalorder 2, %s20
      // Predicated region
      $region57: #{tpu_custom_call.1} parent=5 // pred_check
        %p683 = pneg %p682
      $region58: #{tpu_custom_call.1} parent=5 // pred_check_branch
        %685 = sbr.rel (%p683) target = $region60
      $region59: #{tpu_custom_call.1} parent=5 // pred_region
        %s686 = ssub.s32 %s20, 2
        // Predicated region
        $region61: #{tpu_custom_call.1} parent=59 // pred_check
          %p687 = pneg %p143
        $region62: #{tpu_custom_call.1} parent=59 // pred_check_branch
          %689 = sbr.rel (%p687) target = $region64
        $region63: #{tpu_custom_call.1} parent=59 // pred_region
          %s690 = sand.u32 %s128, 1
          %s691 = scalar_lea.sflag [#allocation4], %s690
          %s692 = sand.u32 %s128, 1
          %s693 = smul.addr %s692, 64
          %s694 = scalar_lea.vmem [#allocation10], %s693
          %696 = dma.done %s691, 1024
        $region64: #{tpu_custom_call.1} parent=59 // pred_fallthru
          _
      $region60: #{tpu_custom_call.1} parent=5 // pred_fallthru
        _
    $region6: #{tpu_custom_call.1} parent=1 // loop_footer
      %s24 = sadd.s32 1, %s20
    $region7: #{tpu_custom_call.1} parent=1 // loop_footer_branch
      %19 = sbr.rel target = $region3
    $region8: #{tpu_custom_call.1} parent=1 // loop_exit
      _
    %697 = vsyncpa [#allocation3], 1
    %s698 = scalar_lea.sflag [#allocation3], 1
    %699 = vsyncpa %s698, 1
    %700 = vsyncpa [#allocation6], 1
    %s701 = scalar_lea.sflag [#allocation6], 1
    %702 = vsyncpa %s701, 1
    %703 = vsyncpa [#allocation9], 1
    %704 = vsyncpa [#allocation4], 1
    %s705 = scalar_lea.sflag [#allocation4], 1
    %706 = vsyncpa %s705, 1

</llo_original>
